<compile_context>
chip_gen: v7x
topology: tpu7x:2x2x1
jax: 0.10.0
libtpu: 0.0.40
codegen_flags: <defaults>
</compile_context>

<pallas_src>
import jax
import jax.numpy as jnp
import numpy as np
from jax.experimental import pallas as pl
from jax.experimental.pallas import tpu as pltpu


# ---------------------------------------------------------------------------
# Kernel 1: LeakyReLU + row-phase-folded 3x3 conv (single stacked MXU matmul)
# + per-batch BN partial statistics.  One grid step per batch element.
# ---------------------------------------------------------------------------
def _make_conv_stats_kernel(Cin, Cout, WPP, LV):
    f32 = jnp.float32

    def conv_stats_kernel(x_ref, w_ref, m_ref, y_ref, st_ref):
        # x_ref : (Cin, LIN)       f32  flat, 2x col-upsampled, zero-haloed
        # w_ref : (2*Cout, 9*Cin)  bf16 stacked row-phase folded 3x3 weights
        # m_ref : (1, LV)          f32  valid-column mask (q % WPP < WP)
        # y_ref : (2*Cout, LV)     bf16 conv output, row phases stacked on rows
        # st_ref: (Cout, 2)        f32  per-batch [sum, sumsq] over valid cols
        xv = x_ref[...]
        h = jnp.where(xv > 0, xv, 0.1 * xv)        # LeakyReLU(0.1); pads stay 0

        # Shared im2col for BOTH row phases: 9 lane-shifted slices
        # (row tap rr in {0,1,2}, col tap dx in {0,1,2}), one sublane concat.
        pieces = [h[:, rr * WPP + dx: rr * WPP + dx + LV]
                  for rr in range(3) for dx in range(3)]
        patches = jnp.concatenate(pieces, axis=0).astype(jnp.bfloat16)  # (9*Cin, LV)

        # Single stacked matmul: rows [0:Cout) = phase 0, [Cout:2*Cout) = phase 1.
        y = jnp.dot(w_ref[...], patches, preferred_element_type=f32)    # (2*Cout, LV) f32

        # BN partials from the f32 accumulator (bf16 staging does not touch stats).
        m = m_ref[...]
        ym = y * m
        s2 = jnp.sum(ym, axis=1, keepdims=True)        # (2*Cout, 1)
        ss2 = jnp.sum(y * ym, axis=1, keepdims=True)   # (2*Cout, 1)
        s = s2[:Cout] + s2[Cout:]                      # sum both row phases
        ss = ss2[:Cout] + ss2[Cout:]
        st_ref[...] = jnp.concatenate([s, ss], axis=1)  # (Cout, 2)

        y_ref[...] = y.astype(jnp.bfloat16)             # bf16 staging of y

    return conv_stats_kernel


# ---------------------------------------------------------------------------
# Kernel 2: lane-dense BN affine on the flat (2*Cout, LV) layout.
# Junk-column trim + row-phase interleave happen in XLA afterwards.
# ---------------------------------------------------------------------------
def _bn_affine_kernel(y_ref, sc_ref, sh_ref, o_ref):
    # y_ref : (2*Cout, LV) bf16 ; sc/sh : (2*Cout, 1) f32 ; o_ref : (2*Cout, LV) f32
    o_ref[...] = y_ref[...].astype(jnp.float32) * sc_ref[...] + sh_ref[...]


# ---------------------------------------------------------------------------
# Full GBlock forward (NCHW in / NCHW out).
# ---------------------------------------------------------------------------
def gblock_forward(x_nchw, w_hwio, bias, gamma, beta, eps=1e-5):
    del bias                                   # cancels exactly under training BN
    f32 = jnp.float32

    N, Cin, H, W = x_nchw.shape
    Cout = w_hwio.shape[-1]
    HP, WP = 2 * H, 2 * W                      # output spatial size
    WPP = WP + 2                               # col-upsampled + halo row width
    LV = H * WPP                               # flat row-phase plane length
    LIN0 = (H + 2) * WPP + 2                   # max im2col tap overshoot = 2
    LIN = ((LIN0 + 127) // 128) * 128          # lane-pad to multiple of 128

    # ---- XLA plumbing (transpose-free): 2x column nearest-upsample, zero
    # halo, row-flatten.  The 2x H-upsample is folded into the weights
    # (subpixel identity), so only the column-upsampled tensor exists.
    xc = jnp.repeat(x_nchw.astype(f32), 2, axis=3)          # (N, Cin, H, 2W)
    xcp = jnp.pad(xc, ((0, 0), (0, 0), (1, 1), (1, 1)))     # (N, Cin, H+2, WPP)
    xf = xcp.reshape(N, Cin, (H + 2) * WPP)
    xf = jnp.pad(xf, ((0, 0), (0, 0), (0, LIN - (H + 2) * WPP)))

    # ---- Stacked row-phase folded 3x3 weights (2*Cout, 9*Cin).
    # Output row 2i+py only touches padded source rows {i+py, i+py+1}:
    #   phase 0: rr=0 -> w[0], rr=1 -> w[1]+w[2], rr=2 -> 0
    #   phase 1: rr=0 -> 0,    rr=1 -> w[0]+w[1], rr=2 -> w[2]
    w = w_hwio.astype(f32)                                   # (3, 3, Cin, Cout)
    zero = jnp.zeros_like(w[0])
    wr0 = jnp.stack([w[0], w[1] + w[2], zero], axis=0)       # (3, 3, Cin, Cout)
    wr1 = jnp.stack([zero, w[0] + w[1], w[2]], axis=0)
    wf9 = jnp.stack([wr0, wr1], axis=0)                      # (2, 3, 3, Cin, Cout)
    w_big = jnp.transpose(wf9, (0, 4, 1, 2, 3)).reshape(2 * Cout, 9 * Cin)
    w_big = w_big.astype(jnp.bfloat16)

    # valid-column mask for flat coordinate q = i*WPP + b  (b < 2W is valid)
    mask = jnp.asarray(((np.arange(LV) % WPP) < WP).astype(np.float32)
                       ).reshape(1, LV)

    # ------------------ kernel 1: LeakyReLU + conv + per-batch BN partials ---
    y, stats = pl.pallas_call(
        _make_conv_stats_kernel(Cin, Cout, WPP, LV),
        out_shape=(jax.ShapeDtypeStruct((N, 2 * Cout, LV), jnp.bfloat16),
                   jax.ShapeDtypeStruct((N, Cout, 2), f32)),
        grid_spec=pltpu.PrefetchScalarGridSpec(
            num_scalar_prefetch=0,
            grid=(N,),
            in_specs=[
                pl.BlockSpec((None, Cin, LIN), lambda n: (n, 0, 0)),
                pl.BlockSpec((2 * Cout, 9 * Cin), lambda n: (0, 0)),
                pl.BlockSpec((1, LV), lambda n: (0, 0)),
            ],
            out_specs=[
                pl.BlockSpec((None, 2 * Cout, LV), lambda n: (n, 0, 0)),
                pl.BlockSpec((None, Cout, 2), lambda n: (n, 0, 0)),
            ]),
        compiler_params=pltpu.CompilerParams(
            dimension_semantics=("parallel",)),
    )(xf, w_big, mask)

    # ---- BN batch statistics (training mode: biased variance), in f32.
    tot = jnp.sum(stats, axis=0)                             # (Cout, 2)
    count = jnp.asarray(N * HP * WP, f32)
    mean = tot[:, 0] / count
    var = tot[:, 1] / count - mean * mean
    inv = jax.lax.rsqrt(var + eps)
    g = gamma.astype(f32)
    scale = g * inv                                          # (Cout,)
    shift = beta.astype(f32) - mean * scale
    scale2 = jnp.concatenate([scale, scale]).reshape(2 * Cout, 1)
    shift2 = jnp.concatenate([shift, shift]).reshape(2 * Cout, 1)

    # ------------------ kernel 2: lane-dense BN affine -----------------------
    y_bn = pl.pallas_call(
        _bn_affine_kernel,
        out_shape=jax.ShapeDtypeStruct((N, 2 * Cout, LV), f32),
        grid_spec=pltpu.PrefetchScalarGridSpec(
            num_scalar_prefetch=0,
            grid=(N,),
            in_specs=[
                pl.BlockSpec((None, 2 * Cout, LV), lambda n: (n, 0, 0)),
                pl.BlockSpec((2 * Cout, 1), lambda n: (0, 0)),
                pl.BlockSpec((2 * Cout, 1), lambda n: (0, 0)),
            ],
            out_specs=pl.BlockSpec((None, 2 * Cout, LV), lambda n: (n, 0, 0))),
        compiler_params=pltpu.CompilerParams(
            dimension_semantics=("parallel",)),
    )(y, scale2, shift2)

    # ---- Trim im2col junk columns + interleave row phases (XLA, HBM-BW ops,
    # kept out of the kernels so all kernel stores stay lane-dense).
    out = y_bn.reshape(N, 2, Cout, H, WPP)[:, :, :, :, :WP]  # (N, 2, Cout, H, WP)
    out = jnp.transpose(out, (0, 2, 3, 1, 4)).reshape(N, Cout, HP, WP)
    return out


# ---------------------------------------------------------------------------
# Pure-JAX reference of the PyTorch forward (bias included, all f32).
# ---------------------------------------------------------------------------
def ref_forward(x_nchw, w_hwio, bias, gamma, beta):
    h = jnp.where(x_nchw > 0, x_nchw, 0.1 * x_nchw)
    h = jnp.repeat(jnp.repeat(h, 2, axis=2), 2, axis=3)
    w_oihw = jnp.transpose(w_hwio, (3, 2, 0, 1))
    y = jax.lax.conv_general_dilated(
        h, w_oihw, window_strides=(1, 1), padding=((1, 1), (1, 1)),
        dimension_numbers=("NCHW", "OIHW", "NCHW"))
    y = y + bias.reshape(1, -1, 1, 1)
    mean = y.mean(axis=(0, 2, 3), keepdims=True)
    var = ((y - mean) ** 2).mean(axis=(0, 2, 3), keepdims=True)
    return ((y - mean) * jax.lax.rsqrt(var + 1e-5)
            * gamma.reshape(1, -1, 1, 1) + beta.reshape(1, -1, 1, 1))


if __name__ == "__main__":
    # Small shapes consistent with GBlock(in_channels=4, out_channels=8).
    N, Cin, Cout, H, W = 2, 4, 8, 16, 16

    key = jax.random.PRNGKey(0)
    kx, kw, kb, kg, kbt = jax.random.split(key, 5)

    x = jax.random.normal(kx, (N, Cin, H, W), dtype=jnp.float32)

    # Deterministic synthetic parameters (conv1 + bn1; conv2/bn2/conv_sc are
    # unused by the module's forward pass).
    w_oihw = 0.1 * jax.random.normal(kw, (Cout, Cin, 3, 3), dtype=jnp.float32)
    w_hwio = jnp.transpose(w_oihw, (2, 3, 1, 0))             # (3, 3, Cin, Cout)
    bias = 0.1 * jax.random.normal(kb, (Cout,), dtype=jnp.float32)
    gamma = 1.0 + 0.1 * jax.random.normal(kg, (Cout,), dtype=jnp.float32)
    beta = 0.1 * jax.random.normal(kbt, (Cout,), dtype=jnp.float32)

    fwd = jax.jit(gblock_forward)
    out = jax.block_until_ready(fwd(x, w_hwio, bias, gamma, beta))
    ref = jax.block_until_ready(ref_forward(x, w_hwio, bias, gamma, beta))

    assert out.shape == (N, Cout, 2 * H, 2 * W)
    err = float(jnp.max(jnp.abs(out - ref)))
    # bf16 MXU operands + bf16 staging of the conv output relax the tolerance
    # vs the all-f32 reference; BN statistics themselves are accumulated in f32.
    assert err < 5e-2, f"mismatch vs reference: max abs err {err}"

    print("KERNEL_OK")
</pallas_src>

<mosaic_0001>
module attributes {stable_mosaic.version = 11 : i64} {
  func.func @conv_stats_kernel(%arg0: i32, %arg1: memref<1x4x640xf32, #tpu.memory_space<vmem>>, %arg2: memref<16x36xbf16, #tpu.memory_space<vmem>>, %arg3: memref<1x544xf32, #tpu.memory_space<vmem>>, %arg4: memref<1x16x544xbf16, #tpu.memory_space<vmem>>, %arg5: memref<1x8x2xf32, #tpu.memory_space<vmem>>) attributes {dimension_semantics = [#tpu.dimension_semantics<parallel>], iteration_bounds = array<i64: 2>, scalar_prefetch = 0 : i64, scratch_operands = 0 : i64, tpu.core_type = #tpu.core_type<tc>, window_params = [{transform_indices = @transform_0, window_bounds = array<i64: 1, 4, 640>}, {pipeline_mode = #tpu.pipeline_mode<synchronous>, transform_indices = @transform_1, window_bounds = array<i64: 16, 36>}, {pipeline_mode = #tpu.pipeline_mode<synchronous>, transform_indices = @transform_2, window_bounds = array<i64: 1, 544>}, {transform_indices = @transform_3, window_bounds = array<i64: 1, 16, 544>}, {transform_indices = @transform_4, window_bounds = array<i64: 1, 8, 2>}]} {
    %c0 = arith.constant 0 : index
    %c0_0 = arith.constant 0 : index
    %c0_1 = arith.constant 0 : index
    %0 = vector.load %arg1[%c0, %c0_0, %c0_1] : memref<1x4x640xf32, #tpu.memory_space<vmem>>, vector<1x4x640xf32>
    %1 = vector.shape_cast %0 : vector<1x4x640xf32> to vector<4x640xf32>
    %cst = arith.constant 0.000000e+00 : f32
    %2 = vector.broadcast %cst : f32 to vector<4x640xf32>
    %3 = arith.cmpf ogt, %1, %2 : vector<4x640xf32>
    %cst_2 = arith.constant 1.000000e-01 : f32
    %4 = vector.broadcast %cst_2 : f32 to vector<4x640xf32>
    %5 = arith.mulf %4, %1 : vector<4x640xf32>
    %6 = arith.select %3, %1, %5 : vector<4x640xi1>, vector<4x640xf32>
    %7 = vector.extract_strided_slice %6 {offsets = [0, 0], sizes = [4, 544], strides = [1, 1]} : vector<4x640xf32> to vector<4x544xf32>
    %8 = vector.extract_strided_slice %6 {offsets = [0, 1], sizes = [4, 544], strides = [1, 1]} : vector<4x640xf32> to vector<4x544xf32>
    %9 = vector.extract_strided_slice %6 {offsets = [0, 2], sizes = [4, 544], strides = [1, 1]} : vector<4x640xf32> to vector<4x544xf32>
    %10 = vector.extract_strided_slice %6 {offsets = [0, 34], sizes = [4, 544], strides = [1, 1]} : vector<4x640xf32> to vector<4x544xf32>
    %11 = vector.extract_strided_slice %6 {offsets = [0, 35], sizes = [4, 544], strides = [1, 1]} : vector<4x640xf32> to vector<4x544xf32>
    %12 = vector.extract_strided_slice %6 {offsets = [0, 36], sizes = [4, 544], strides = [1, 1]} : vector<4x640xf32> to vector<4x544xf32>
    %13 = vector.extract_strided_slice %6 {offsets = [0, 68], sizes = [4, 544], strides = [1, 1]} : vector<4x640xf32> to vector<4x544xf32>
    %14 = vector.extract_strided_slice %6 {offsets = [0, 69], sizes = [4, 544], strides = [1, 1]} : vector<4x640xf32> to vector<4x544xf32>
    %15 = vector.extract_strided_slice %6 {offsets = [0, 70], sizes = [4, 544], strides = [1, 1]} : vector<4x640xf32> to vector<4x544xf32>
    %16 = tpu.concatenate %7, %8, %9, %10, %11, %12, %13, %14, %15 in 0 : vector<4x544xf32>, vector<4x544xf32>, vector<4x544xf32>, vector<4x544xf32>, vector<4x544xf32>, vector<4x544xf32>, vector<4x544xf32>, vector<4x544xf32>, vector<4x544xf32> -> vector<36x544xf32>
    %17 = arith.truncf %16 : vector<36x544xf32> to vector<36x544xbf16>
    %c0_3 = arith.constant 0 : index
    %c0_4 = arith.constant 0 : index
    %18 = vector.load %arg2[%c0_3, %c0_4] : memref<16x36xbf16, #tpu.memory_space<vmem>>, vector<16x36xbf16>
    %cst_5 = arith.constant dense<0.000000e+00> : vector<16x544xf32>
    %19 = tpu.matmul %18, %17, %cst_5 {dimension_numbers = #tpu.dot_dimension_numbers<[1], [0], [0], [1], [0, 0, 1, 1], [], []>} : vector<16x36xbf16>, vector<36x544xbf16>, vector<16x544xf32> -> vector<16x544xf32>
    %c0_6 = arith.constant 0 : index
    %c0_7 = arith.constant 0 : index
    %20 = vector.load %arg3[%c0_6, %c0_7] : memref<1x544xf32, #tpu.memory_space<vmem>>, vector<1x544xf32>
    %21 = vector.broadcast %20 : vector<1x544xf32> to vector<16x544xf32>
    %22 = arith.mulf %19, %21 : vector<16x544xf32>
    %cst_8 = arith.constant dense<0.000000e+00> : vector<16xf32>
    %23 = vector.multi_reduction <add>, %22, %cst_8 [1] : vector<16x544xf32> to vector<16xf32>
    %24 = vector.shape_cast %23 : vector<16xf32> to vector<16x1xf32>
    %25 = arith.mulf %19, %22 : vector<16x544xf32>
    %cst_9 = arith.constant dense<0.000000e+00> : vector<16xf32>
    %26 = vector.multi_reduction <add>, %25, %cst_9 [1] : vector<16x544xf32> to vector<16xf32>
    %27 = vector.shape_cast %26 : vector<16xf32> to vector<16x1xf32>
    %28 = vector.extract_strided_slice %24 {offsets = [0, 0], sizes = [8, 1], strides = [1, 1]} : vector<16x1xf32> to vector<8x1xf32>
    %29 = vector.extract_strided_slice %24 {offsets = [8, 0], sizes = [8, 1], strides = [1, 1]} : vector<16x1xf32> to vector<8x1xf32>
    %30 = arith.addf %28, %29 : vector<8x1xf32>
    %31 = vector.extract_strided_slice %27 {offsets = [0, 0], sizes = [8, 1], strides = [1, 1]} : vector<16x1xf32> to vector<8x1xf32>
    %32 = vector.extract_strided_slice %27 {offsets = [8, 0], sizes = [8, 1], strides = [1, 1]} : vector<16x1xf32> to vector<8x1xf32>
    %33 = arith.addf %31, %32 : vector<8x1xf32>
    %34 = tpu.concatenate %30, %33 in 1 : vector<8x1xf32>, vector<8x1xf32> -> vector<8x2xf32>
    %c0_10 = arith.constant 0 : index
    %c0_11 = arith.constant 0 : index
    %c0_12 = arith.constant 0 : index
    %35 = vector.load %arg5[%c0_10, %c0_11, %c0_12] : memref<1x8x2xf32, #tpu.memory_space<vmem>>, vector<1x8x2xf32>
    %36 = vector.shape_cast %35 : vector<1x8x2xf32> to vector<8x2xf32>
    %37 = vector.shape_cast %34 : vector<8x2xf32> to vector<1x8x2xf32>
    tpu.vector_store %arg5[%c0_10, %c0_11, %c0_12], %37 {strides = array<i32>} : memref<1x8x2xf32, #tpu.memory_space<vmem>>, vector<1x8x2xf32>,
    %38 = arith.truncf %19 : vector<16x544xf32> to vector<16x544xbf16>
    %c0_13 = arith.constant 0 : index
    %c0_14 = arith.constant 0 : index
    %c0_15 = arith.constant 0 : index
    %39 = vector.load %arg4[%c0_13, %c0_14, %c0_15] : memref<1x16x544xbf16, #tpu.memory_space<vmem>>, vector<1x16x544xbf16>
    %40 = vector.shape_cast %39 : vector<1x16x544xbf16> to vector<16x544xbf16>
    %41 = vector.shape_cast %38 : vector<16x544xbf16> to vector<1x16x544xbf16>
    tpu.vector_store %arg4[%c0_13, %c0_14, %c0_15], %41 {strides = array<i32>} : memref<1x16x544xbf16, #tpu.memory_space<vmem>>, vector<1x16x544xbf16>,
    return
  }
  func.func @transform_0(%arg0: i32) -> (i32, i32, i32) {
    %c0_i32 = arith.constant 0 : i32
    %c0_i32_0 = arith.constant 0 : i32
    %c0_i32_1 = arith.constant 0 : i32
    return %arg0, %c0_i32, %c0_i32_0 : i32, i32, i32
  }
  func.func @transform_1(%arg0: i32) -> (i32, i32) {
    %c0_i32 = arith.constant 0 : i32
    %c0_i32_0 = arith.constant 0 : i32
    %c0_i32_1 = arith.constant 0 : i32
    return %c0_i32, %c0_i32_0 : i32, i32
  }
  func.func @transform_2(%arg0: i32) -> (i32, i32) {
    %c0_i32 = arith.constant 0 : i32
    %c0_i32_0 = arith.constant 0 : i32
    %c0_i32_1 = arith.constant 0 : i32
    return %c0_i32, %c0_i32_0 : i32, i32
  }
  func.func @transform_3(%arg0: i32) -> (i32, i32, i32) {
    %c0_i32 = arith.constant 0 : i32
    %c0_i32_0 = arith.constant 0 : i32
    %c0_i32_1 = arith.constant 0 : i32
    return %arg0, %c0_i32, %c0_i32_0 : i32, i32, i32
  }
  func.func @transform_4(%arg0: i32) -> (i32, i32, i32) {
    %c0_i32 = arith.constant 0 : i32
    %c0_i32_0 = arith.constant 0 : i32
    %c0_i32_1 = arith.constant 0 : i32
    return %arg0, %c0_i32, %c0_i32_0 : i32, i32, i32
  }
}

module attributes {stable_mosaic.version = 11 : i64} {
  func.func @_bn_affine_kernel(%arg0: i32, %arg1: memref<1x16x544xbf16, #tpu.memory_space<vmem>>, %arg2: memref<16x1xf32, #tpu.memory_space<vmem>>, %arg3: memref<16x1xf32, #tpu.memory_space<vmem>>, %arg4: memref<1x16x544xf32, #tpu.memory_space<vmem>>) attributes {dimension_semantics = [#tpu.dimension_semantics<parallel>], iteration_bounds = array<i64: 2>, scalar_prefetch = 0 : i64, scratch_operands = 0 : i64, tpu.core_type = #tpu.core_type<tc>, window_params = [{transform_indices = @transform_0, window_bounds = array<i64: 1, 16, 544>}, {pipeline_mode = #tpu.pipeline_mode<synchronous>, transform_indices = @transform_1, window_bounds = array<i64: 16, 1>}, {pipeline_mode = #tpu.pipeline_mode<synchronous>, transform_indices = @transform_2, window_bounds = array<i64: 16, 1>}, {transform_indices = @transform_3, window_bounds = array<i64: 1, 16, 544>}]} {
    %c0 = arith.constant 0 : index
    %c0_0 = arith.constant 0 : index
    %c0_1 = arith.constant 0 : index
    %0 = vector.load %arg1[%c0, %c0_0, %c0_1] : memref<1x16x544xbf16, #tpu.memory_space<vmem>>, vector<1x16x544xbf16>
    %1 = vector.shape_cast %0 : vector<1x16x544xbf16> to vector<16x544xbf16>
    %2 = arith.extf %1 : vector<16x544xbf16> to vector<16x544xf32>
    %c0_2 = arith.constant 0 : index
    %c0_3 = arith.constant 0 : index
    %3 = vector.load %arg2[%c0_2, %c0_3] : memref<16x1xf32, #tpu.memory_space<vmem>>, vector<16x1xf32>
    %4 = vector.broadcast %3 : vector<16x1xf32> to vector<16x544xf32>
    %5 = arith.mulf %2, %4 : vector<16x544xf32>
    %c0_4 = arith.constant 0 : index
    %c0_5 = arith.constant 0 : index
    %6 = vector.load %arg3[%c0_4, %c0_5] : memref<16x1xf32, #tpu.memory_space<vmem>>, vector<16x1xf32>
    %7 = vector.broadcast %6 : vector<16x1xf32> to vector<16x544xf32>
    %8 = arith.addf %5, %7 : vector<16x544xf32>
    %c0_6 = arith.constant 0 : index
    %c0_7 = arith.constant 0 : index
    %c0_8 = arith.constant 0 : index
    %9 = vector.load %arg4[%c0_6, %c0_7, %c0_8] : memref<1x16x544xf32, #tpu.memory_space<vmem>>, vector<1x16x544xf32>
    %10 = vector.shape_cast %9 : vector<1x16x544xf32> to vector<16x544xf32>
    %11 = vector.shape_cast %8 : vector<16x544xf32> to vector<1x16x544xf32>
    tpu.vector_store %arg4[%c0_6, %c0_7, %c0_8], %11 {strides = array<i32>} : memref<1x16x544xf32, #tpu.memory_space<vmem>>, vector<1x16x544xf32>,
    return
  }
  func.func @transform_0(%arg0: i32) -> (i32, i32, i32) {
    %c0_i32 = arith.constant 0 : i32
    %c0_i32_0 = arith.constant 0 : i32
    %c0_i32_1 = arith.constant 0 : i32
    return %arg0, %c0_i32, %c0_i32_0 : i32, i32, i32
  }
  func.func @transform_1(%arg0: i32) -> (i32, i32) {
    %c0_i32 = arith.constant 0 : i32
    %c0_i32_0 = arith.constant 0 : i32
    %c0_i32_1 = arith.constant 0 : i32
    return %c0_i32, %c0_i32_0 : i32, i32
  }
  func.func @transform_2(%arg0: i32) -> (i32, i32) {
    %c0_i32 = arith.constant 0 : i32
    %c0_i32_0 = arith.constant 0 : i32
    %c0_i32_1 = arith.constant 0 : i32
    return %c0_i32, %c0_i32_0 : i32, i32
  }
  func.func @transform_3(%arg0: i32) -> (i32, i32, i32) {
    %c0_i32 = arith.constant 0 : i32
    %c0_i32_0 = arith.constant 0 : i32
    %c0_i32_1 = arith.constant 0 : i32
    return %arg0, %c0_i32, %c0_i32_0 : i32, i32, i32
  }
}

</mosaic_0001>

<llo_original>
// kernel: gblock_forward.3
$region0: #{gblock_forward.3}
  #allocation0 [shape = 'u32[]', space=smem, size = 0x4, offset = 0x4, fixed_abs, tag = 'smem constant byte address 0x4 - core index']
  #allocation1 [shape = 'u32[144,128]{1,0:T(1,128)}', space=vmem, size = 0x12000, scoped, tag = 'internal scratch']
  %s0 = inlined_call_operand.vmem [shape: bf16[2,16,544], index: 0, kind: input, shape index: {}]
  %s1 = inlined_call_operand.vmem [shape: f32[16,1], index: 1, kind: input, shape index: {}]
  %s2 = inlined_call_operand.vmem [shape: f32[16,1], index: 2, kind: input, shape index: {}]
  %s3 = inlined_call_operand.vmem [shape: f32[2,16,544], index: 3, kind: output, shape index: {}]
  %s4 = sld [smem:[#allocation0]]
  $region45: #{gblock_forward.3} parent=0
    _
  %s6 = ssub.s32 1, %s4
  %s7 = scalar_select 0, %s6, %s4
  loop: start=0, step=1, limit=4
  $region2: #{gblock_forward.3} parent=0 // loop_pre_header
    _
  $region3: #{gblock_forward.3} parent=0 // loop_header
    %s9 = sphi 0, %s13
    %p10 = scmp.ge.s32.totalorder %s9, 4
    %s19 = sphi 0, %s21
    %s22 = sphi 0, %s19
    %s23 = sphi 0, %s22
    %s39 = sphi 0, %s23
    %s43 = sphi 0, %s43
    %s45 = sphi 0, %s43
    %s46 = sphi 0, %s45
    %s60 = sphi 0, %s46
    %s64 = sphi 0, %s64
    %s66 = sphi 0, %s64
    %s67 = sphi 0, %s66
    %s81 = sphi 0, %s67
    %s87 = sphi 0, %s89
    %s90 = sphi 0, %s87
    %s91 = sphi 0, %s90
    %s107 = sphi 0, %s91
  $region4: #{gblock_forward.3} parent=0 // loop_header_branch
    %12 = sbr.rel (%p10) target = $region8
  $region5: #{gblock_forward.3} parent=0 // loop_body
    %s14 = ssub.s32 %s9, 1
    %s15 = ssub.s32 %s9, 2
    %s16 = sadd.s32 %s9, 1
    %s17 = ssub.s32 %s9, %s16
    %p18 = scmp.eq.s32.totalorder %s17, 0
    %s20 = sadd.s32 %s19, 1
    %s21 = scalar_select %p18, %s19, %s20
    %p24 = pneg %p18
    %p25 = scmp.eq.s32.totalorder %s9, 1
    %p26 = por %p24, %p25
    %p27 = scmp.ne.s32.totalorder %s19, %s22
    %p28 = scmp.eq.s32.totalorder %s9, 0
    %p29 = por %p27, %p28
    %p30 = scmp.ne.s32.totalorder %s19, %s22
    %p31 = scmp.eq.s32.totalorder %s14, 1
    %p32 = por %p30, %p31
    %p33 = scmp.ne.s32.totalorder %s22, %s23
    %p34 = scmp.eq.s32.totalorder %s14, 0
    %p35 = por %p33, %p34
    %p36 = scmp.ne.s32.totalorder %s22, %s23
    %p37 = scmp.eq.s32.totalorder %s15, 1
    %p38 = por %p36, %p37
    %p40 = scmp.ne.s32.totalorder %s23, %s39
    %p41 = scmp.eq.s32.totalorder %s15, 0
    %p42 = por %p40, %p41
    %s44 = sadd.s32 %s43, 1
    %p47 = scmp.eq.s32.totalorder %s9, 1
    %p48 = scmp.ne.s32.totalorder %s43, %s45
    %p49 = scmp.eq.s32.totalorder %s9, 0
    %p50 = por %p48, %p49
    %p51 = scmp.ne.s32.totalorder %s43, %s45
    %p52 = scmp.eq.s32.totalorder %s14, 1
    %p53 = por %p51, %p52
    %p54 = scmp.ne.s32.totalorder %s45, %s46
    %p55 = scmp.eq.s32.totalorder %s14, 0
    %p56 = por %p54, %p55
    %p57 = scmp.ne.s32.totalorder %s45, %s46
    %p58 = scmp.eq.s32.totalorder %s15, 1
    %p59 = por %p57, %p58
    %p61 = scmp.ne.s32.totalorder %s46, %s60
    %p62 = scmp.eq.s32.totalorder %s15, 0
    %p63 = por %p61, %p62
    %s65 = sadd.s32 %s64, 1
    %p68 = scmp.eq.s32.totalorder %s9, 1
    %p69 = scmp.ne.s32.totalorder %s64, %s66
    %p70 = scmp.eq.s32.totalorder %s9, 0
    %p71 = por %p69, %p70
    %p72 = scmp.ne.s32.totalorder %s64, %s66
    %p73 = scmp.eq.s32.totalorder %s14, 1
    %p74 = por %p72, %p73
    %p75 = scmp.ne.s32.totalorder %s66, %s67
    %p76 = scmp.eq.s32.totalorder %s14, 0
    %p77 = por %p75, %p76
    %p78 = scmp.ne.s32.totalorder %s66, %s67
    %p79 = scmp.eq.s32.totalorder %s15, 1
    %p80 = por %p78, %p79
    %p82 = scmp.ne.s32.totalorder %s67, %s81
    %p83 = scmp.eq.s32.totalorder %s15, 0
    %p84 = por %p82, %p83
    %s85 = ssub.s32 %s9, %s16
    %p86 = scmp.eq.s32.totalorder %s85, 0
    %s88 = sadd.s32 %s87, 1
    %s89 = scalar_select %p86, %s87, %s88
    %p92 = pneg %p86
    %p93 = scmp.eq.s32.totalorder %s9, 1
    %p94 = por %p92, %p93
    %p95 = scmp.ne.s32.totalorder %s87, %s90
    %p96 = scmp.eq.s32.totalorder %s9, 0
    %p97 = por %p95, %p96
    %p98 = scmp.ne.s32.totalorder %s87, %s90
    %p99 = scmp.eq.s32.totalorder %s14, 1
    %p100 = por %p98, %p99
    %p101 = scmp.ne.s32.totalorder %s90, %s91
    %p102 = scmp.eq.s32.totalorder %s14, 0
    %p103 = por %p101, %p102
    %p104 = scmp.ne.s32.totalorder %s90, %s91
    %p105 = scmp.eq.s32.totalorder %s15, 1
    %p106 = por %p104, %p105
    %p108 = scmp.ne.s32.totalorder %s91, %s107
    %p109 = scmp.eq.s32.totalorder %s15, 0
    %p110 = por %p108, %p109
    %p111 = scmp.le.s32.totalorder 1, %s9
    %p112 = scmp.lt.s32.totalorder %s9, 3
    %p113 = pnand %p111, %p112
    %p114 = pneg %p113
    // Predicated region
    $region9: #{gblock_forward.3} parent=5 // pred_check
      _
    $region10: #{gblock_forward.3} parent=5 // pred_check_branch
      %116 = sbr.rel (%p113) target = $region12
    $region11: #{gblock_forward.3} parent=5 // pred_region
      %s117 = ssub.s32 %s9, 1
      // Predicated region
      $region13: #{gblock_forward.3} parent=11 // pred_check
        %p118 = pneg %p56
      $region14: #{gblock_forward.3} parent=11 // pred_check_branch
        %120 = sbr.rel (%p118) target = $region16
      $region15: #{gblock_forward.3} parent=11 // pred_region
        _
      $region16: #{gblock_forward.3} parent=11 // pred_fallthru
        _
      // Predicated region
      $region17: #{gblock_forward.3} parent=11 // pred_check
        %p121 = pneg %p77
      $region18: #{gblock_forward.3} parent=11 // pred_check_branch
        %123 = sbr.rel (%p121) target = $region20
      $region19: #{gblock_forward.3} parent=11 // pred_region
        _
      $region20: #{gblock_forward.3} parent=11 // pred_fallthru
        _
    $region12: #{gblock_forward.3} parent=5 // pred_fallthru
      _
    %p124 = scmp.lt.s32.totalorder %s9, 2
    // Predicated region
    $region21: #{gblock_forward.3} parent=5 // pred_check
      %p125 = pneg %p124
    $region22: #{gblock_forward.3} parent=5 // pred_check_branch
      %127 = sbr.rel (%p125) target = $region24
    $region23: #{gblock_forward.3} parent=5 // pred_region
      // Predicated region
      $region25: #{gblock_forward.3} parent=23 // pred_check
        %p128 = pneg %p29
      $region26: #{gblock_forward.3} parent=23 // pred_check_branch
        %130 = sbr.rel (%p128) target = $region28
      $region27: #{gblock_forward.3} parent=23 // pred_region
        %p131 = scmp.lt.s32.totalorder %s9, 1
        %s132 = scalar_select %p131, %s9, 1
        %s133 = smul.addr %s132, 10
        %s134 = smul.addr %s133, 4
        %s135 = scalar_lea.vmem %s0, %s134
      $region28: #{gblock_forward.3} parent=23 // pred_fallthru
        _
    $region24: #{gblock_forward.3} parent=5 // pred_fallthru
      _
    %p136 = scmp.le.s32.totalorder 1, %s9
    %p137 = scmp.lt.s32.totalorder %s9, 3
    %p138 = pnand %p136, %p137
    %p139 = pneg %p138
    // Predicated region
    $region29: #{gblock_forward.3} parent=5 // pred_check
      _
    $region30: #{gblock_forward.3} parent=5 // pred_check_branch
      %141 = sbr.rel (%p138) target = $region32
    $region31: #{gblock_forward.3} parent=5 // pred_region
      %s142 = ssub.s32 %s9, 1
      %p143 = scmp.lt.s32.totalorder %s14, 1
      %s144 = scalar_select %p143, %s14, 1
      %s145 = smul.addr %s144, 10
      %s146 = smul.addr %s145, 4
      %s147 = scalar_lea.vmem %s0, %s146
      %p148 = pneg %p35
      %p149 = pneg %p32
      %p150 = pneg %p56
      %p151 = pneg %p53
      %p152 = pneg %p77
      %p153 = pneg %p74
      %p154 = pneg %p103
      %p155 = pneg %p100
      %p156 = scmp.lt.s32.totalorder %s14, 1
      %s157 = scalar_select %p156, %s14, 1
      %s158 = smul.addr %s157, 10
      %s159 = smul.addr %s158, 8
      %s160 = scalar_lea.vmem %s3, %s159
      %p161 = scmp.lt.s32.totalorder %s14, 1
      %s162 = scalar_select %p161, %s14, 1
      %s163 = smul.addr %s162, 10
      %s164 = smul.addr %s163, 4
      %s165 = scalar_lea.vmem %s0, %s164
      %p166 = scmp.lt.s32.totalorder %s14, 1
      %s167 = scalar_select %p166, %s14, 1
      %s168 = smul.addr %s167, 10
      %s169 = smul.addr %s168, 8
      %s170 = scalar_lea.vmem %s3, %s169
      %v171 = vld [vmem:[%s165] sm:$0xff]
      %v172 = vld [vmem:[%s165 + $0x8] sm:$0xff]
      %v173 = vld [vmem:[%s165 + $0x10] sm:$0xf]
      %v174 = vld [vmem:[%s165 + $0x14] sm:$0xff]
      %v175 = vld [vmem:[%s165 + $0x1c] sm:$0xff]
      %v176 = vld [vmem:[%s165 + $0x24] sm:$0xf]
      %v177 = vunpack.c.l.bf16 %v171
      %v178 = vunpack.c.h.bf16 %v171
      %v179 = vunpack.c.l.bf16 %v172
      %v180 = vunpack.c.h.bf16 %v172
      %v181 = vunpack.c.l.bf16 %v173
      %v182 = vunpack.c.l.bf16 %v174
      %v183 = vunpack.c.h.bf16 %v174
      %v184 = vunpack.c.l.bf16 %v175
      %v185 = vunpack.c.h.bf16 %v175
      %v186 = vunpack.c.l.bf16 %v176
      %v187 = vld [vmem:[%s1] sm:$0xff]
      %v188 = vld [vmem:[%s1 + $0x8] sm:$0xff]
      %190 = vset.pattern.permute.xlu0 0
      %191 = vperm.xlu0 %190, %v187
      %v192 = vpop.permute.xlu0 %191
      %195 = vset.pattern.permute.xlu0 0
      %196 = vperm.xlu0 %195, %v188
      %v197 = vpop.permute.xlu0 %196
      %v199 = vmul.f32 %v177, %v192
      %v200 = vmul.f32 %v178, %v192
      %v201 = vmul.f32 %v179, %v192
      %v202 = vmul.f32 %v180, %v192
      %v203 = vmul.f32 %v181, %v192
      %v204 = vmul.f32 %v182, %v197
      %v205 = vmul.f32 %v183, %v197
      %v206 = vmul.f32 %v184, %v197
      %v207 = vmul.f32 %v185, %v197
      %v208 = vmul.f32 %v186, %v197
      %v209 = vld [vmem:[%s2] sm:$0xff]
      %v210 = vld [vmem:[%s2 + $0x8] sm:$0xff]
      %212 = vset.pattern.permute.xlu0 0
      %213 = vperm.xlu0 %212, %v209
      %v214 = vpop.permute.xlu0 %213
      %217 = vset.pattern.permute.xlu0 0
      %218 = vperm.xlu0 %217, %v210
      %v219 = vpop.permute.xlu0 %218
      %v221 = vadd.f32 %v199, %v214
      %v222 = vadd.f32 %v200, %v214
      %v223 = vadd.f32 %v201, %v214
      %v224 = vadd.f32 %v202, %v214
      %v225 = vadd.f32 %v203, %v214
      %v226 = vadd.f32 %v204, %v219
      %v227 = vadd.f32 %v205, %v219
      %v228 = vadd.f32 %v206, %v219
      %v229 = vadd.f32 %v207, %v219
      %v230 = vadd.f32 %v208, %v219
      %231 = vst [vmem:[%s170] sm:$0xff] %v221
      %232 = vst [vmem:[%s170 + $0x8] sm:$0xff] %v222
      %233 = vst [vmem:[%s170 + $0x10] sm:$0xff] %v223
      %234 = vst [vmem:[%s170 + $0x18] sm:$0xff] %v224
      %vm235 = vcmask 261120
      %236 = vst.msk [vmem:[%s170 + $0x20] sm:$0xff] %vm235, %v225
      %237 = vst [vmem:[%s170 + $0x28] sm:$0xff] %v226
      %238 = vst [vmem:[%s170 + $0x30] sm:$0xff] %v227
      %239 = vst [vmem:[%s170 + $0x38] sm:$0xff] %v228
      %240 = vst [vmem:[%s170 + $0x40] sm:$0xff] %v229
      %241 = vst.msk [vmem:[%s170 + $0x48] sm:$0xff] %vm235, %v230
      %p242 = scmp.lt.s32.totalorder %s14, 1
      %s243 = scalar_select %p242, %s14, 1
      %s244 = smul.addr %s243, 10
      %s245 = smul.addr %s244, 8
      %s246 = scalar_lea.vmem %s3, %s245
      // Predicated region
      $region33: #{gblock_forward.3} parent=31 // pred_check
        %p247 = pneg %p100
      $region34: #{gblock_forward.3} parent=31 // pred_check_branch
        %249 = sbr.rel (%p247) target = $region36
      $region35: #{gblock_forward.3} parent=31 // pred_region
        _
      $region36: #{gblock_forward.3} parent=31 // pred_fallthru
        _
    $region32: #{gblock_forward.3} parent=5 // pred_fallthru
      _
    %p250 = scmp.le.s32.totalorder 2, %s9
    // Predicated region
    $region37: #{gblock_forward.3} parent=5 // pred_check
      %p251 = pneg %p250
    $region38: #{gblock_forward.3} parent=5 // pred_check_branch
      %253 = sbr.rel (%p251) target = $region40
    $region39: #{gblock_forward.3} parent=5 // pred_region
      %s254 = ssub.s32 %s9, 2
      // Predicated region
      $region41: #{gblock_forward.3} parent=39 // pred_check
        %p255 = pneg %p106
      $region42: #{gblock_forward.3} parent=39 // pred_check_branch
        %257 = sbr.rel (%p255) target = $region44
      $region43: #{gblock_forward.3} parent=39 // pred_region
        %p258 = scmp.lt.s32.totalorder %s15, 1
        %s259 = scalar_select %p258, %s15, 1
        %s260 = smul.addr %s259, 10
        %s261 = smul.addr %s260, 8
        %s262 = scalar_lea.vmem %s3, %s261
      $region44: #{gblock_forward.3} parent=39 // pred_fallthru
        _
    $region40: #{gblock_forward.3} parent=5 // pred_fallthru
      _
  $region6: #{gblock_forward.3} parent=0 // loop_footer
    %s13 = sadd.s32 1, %s9
  $region7: #{gblock_forward.3} parent=0 // loop_footer_branch
    %8 = sbr.rel target = $region3
  $region8: #{gblock_forward.3} parent=0 // loop_exit
    _

// kernel: gblock_forward.2
$region0: #{gblock_forward.2}
  #allocation0 [shape = 'u32[]', space=smem, size = 0x4, offset = 0x4, fixed_abs, tag = 'smem constant byte address 0x4 - core index']
  #allocation1 [shape = 'u32[144,128]{1,0:T(1,128)}', space=vmem, size = 0x12000, scoped, tag = 'internal scratch']
  %s0 = inlined_call_operand.vmem [shape: f32[2,4,640], index: 0, kind: input, shape index: {}]
  %s1 = inlined_call_operand.vmem [shape: bf16[16,36], index: 1, kind: input, shape index: {}]
  %s2 = inlined_call_operand.vmem [shape: f32[1,544], index: 2, kind: input, shape index: {}]
  %s3 = inlined_call_operand.vmem [shape: bf16[2,16,544], index: 3, kind: output, shape index: {0}]
  %s4 = inlined_call_operand.vmem [shape: f32[2,8,2], index: 4, kind: output, shape index: {1}]
  %5 = xla_tuple %s3, %s4
  %s6 = sld [smem:[#allocation0]]
  $region53: #{gblock_forward.2} parent=0
    _
  %s8 = ssub.s32 1, %s6
  %s9 = scalar_select 0, %s8, %s6
  loop: start=0, step=1, limit=4
  $region2: #{gblock_forward.2} parent=0 // loop_pre_header
    _
  $region3: #{gblock_forward.2} parent=0 // loop_header
    %s11 = sphi 0, %s15
    %p12 = scmp.ge.s32.totalorder %s11, 4
    %s21 = sphi 0, %s23
    %s24 = sphi 0, %s21
    %s25 = sphi 0, %s24
    %s41 = sphi 0, %s25
    %s45 = sphi 0, %s45
    %s47 = sphi 0, %s45
    %s48 = sphi 0, %s47
    %s62 = sphi 0, %s48
    %s66 = sphi 0, %s66
    %s68 = sphi 0, %s66
    %s69 = sphi 0, %s68
    %s83 = sphi 0, %s69
    %s89 = sphi 0, %s91
    %s92 = sphi 0, %s89
    %s93 = sphi 0, %s92
    %s109 = sphi 0, %s93
    %s115 = sphi 0, %s117
    %s118 = sphi 0, %s115
    %s119 = sphi 0, %s118
    %s135 = sphi 0, %s119
  $region4: #{gblock_forward.2} parent=0 // loop_header_branch
    %14 = sbr.rel (%p12) target = $region8
  $region5: #{gblock_forward.2} parent=0 // loop_body
    %s16 = ssub.s32 %s11, 1
    %s17 = ssub.s32 %s11, 2
    %s18 = sadd.s32 %s11, 1
    %s19 = ssub.s32 %s11, %s18
    %p20 = scmp.eq.s32.totalorder %s19, 0
    %s22 = sadd.s32 %s21, 1
    %s23 = scalar_select %p20, %s21, %s22
    %p26 = pneg %p20
    %p27 = scmp.eq.s32.totalorder %s11, 1
    %p28 = por %p26, %p27
    %p29 = scmp.ne.s32.totalorder %s21, %s24
    %p30 = scmp.eq.s32.totalorder %s11, 0
    %p31 = por %p29, %p30
    %p32 = scmp.ne.s32.totalorder %s21, %s24
    %p33 = scmp.eq.s32.totalorder %s16, 1
    %p34 = por %p32, %p33
    %p35 = scmp.ne.s32.totalorder %s24, %s25
    %p36 = scmp.eq.s32.totalorder %s16, 0
    %p37 = por %p35, %p36
    %p38 = scmp.ne.s32.totalorder %s24, %s25
    %p39 = scmp.eq.s32.totalorder %s17, 1
    %p40 = por %p38, %p39
    %p42 = scmp.ne.s32.totalorder %s25, %s41
    %p43 = scmp.eq.s32.totalorder %s17, 0
    %p44 = por %p42, %p43
    %s46 = sadd.s32 %s45, 1
    %p49 = scmp.eq.s32.totalorder %s11, 1
    %p50 = scmp.ne.s32.totalorder %s45, %s47
    %p51 = scmp.eq.s32.totalorder %s11, 0
    %p52 = por %p50, %p51
    %p53 = scmp.ne.s32.totalorder %s45, %s47
    %p54 = scmp.eq.s32.totalorder %s16, 1
    %p55 = por %p53, %p54
    %p56 = scmp.ne.s32.totalorder %s47, %s48
    %p57 = scmp.eq.s32.totalorder %s16, 0
    %p58 = por %p56, %p57
    %p59 = scmp.ne.s32.totalorder %s47, %s48
    %p60 = scmp.eq.s32.totalorder %s17, 1
    %p61 = por %p59, %p60
    %p63 = scmp.ne.s32.totalorder %s48, %s62
    %p64 = scmp.eq.s32.totalorder %s17, 0
    %p65 = por %p63, %p64
    %s67 = sadd.s32 %s66, 1
    %p70 = scmp.eq.s32.totalorder %s11, 1
    %p71 = scmp.ne.s32.totalorder %s66, %s68
    %p72 = scmp.eq.s32.totalorder %s11, 0
    %p73 = por %p71, %p72
    %p74 = scmp.ne.s32.totalorder %s66, %s68
    %p75 = scmp.eq.s32.totalorder %s16, 1
    %p76 = por %p74, %p75
    %p77 = scmp.ne.s32.totalorder %s68, %s69
    %p78 = scmp.eq.s32.totalorder %s16, 0
    %p79 = por %p77, %p78
    %p80 = scmp.ne.s32.totalorder %s68, %s69
    %p81 = scmp.eq.s32.totalorder %s17, 1
    %p82 = por %p80, %p81
    %p84 = scmp.ne.s32.totalorder %s69, %s83
    %p85 = scmp.eq.s32.totalorder %s17, 0
    %p86 = por %p84, %p85
    %s87 = ssub.s32 %s11, %s18
    %p88 = scmp.eq.s32.totalorder %s87, 0
    %s90 = sadd.s32 %s89, 1
    %s91 = scalar_select %p88, %s89, %s90
    %p94 = pneg %p88
    %p95 = scmp.eq.s32.totalorder %s11, 1
    %p96 = por %p94, %p95
    %p97 = scmp.ne.s32.totalorder %s89, %s92
    %p98 = scmp.eq.s32.totalorder %s11, 0
    %p99 = por %p97, %p98
    %p100 = scmp.ne.s32.totalorder %s89, %s92
    %p101 = scmp.eq.s32.totalorder %s16, 1
    %p102 = por %p100, %p101
    %p103 = scmp.ne.s32.totalorder %s92, %s93
    %p104 = scmp.eq.s32.totalorder %s16, 0
    %p105 = por %p103, %p104
    %p106 = scmp.ne.s32.totalorder %s92, %s93
    %p107 = scmp.eq.s32.totalorder %s17, 1
    %p108 = por %p106, %p107
    %p110 = scmp.ne.s32.totalorder %s93, %s109
    %p111 = scmp.eq.s32.totalorder %s17, 0
    %p112 = por %p110, %p111
    %s113 = ssub.s32 %s11, %s18
    %p114 = scmp.eq.s32.totalorder %s113, 0
    %s116 = sadd.s32 %s115, 1
    %s117 = scalar_select %p114, %s115, %s116
    %p120 = pneg %p114
    %p121 = scmp.eq.s32.totalorder %s11, 1
    %p122 = por %p120, %p121
    %p123 = scmp.ne.s32.totalorder %s115, %s118
    %p124 = scmp.eq.s32.totalorder %s11, 0
    %p125 = por %p123, %p124
    %p126 = scmp.ne.s32.totalorder %s115, %s118
    %p127 = scmp.eq.s32.totalorder %s16, 1
    %p128 = por %p126, %p127
    %p129 = scmp.ne.s32.totalorder %s118, %s119
    %p130 = scmp.eq.s32.totalorder %s16, 0
    %p131 = por %p129, %p130
    %p132 = scmp.ne.s32.totalorder %s118, %s119
    %p133 = scmp.eq.s32.totalorder %s17, 1
    %p134 = por %p132, %p133
    %p136 = scmp.ne.s32.totalorder %s119, %s135
    %p137 = scmp.eq.s32.totalorder %s17, 0
    %p138 = por %p136, %p137
    %p139 = scmp.le.s32.totalorder 1, %s11
    %p140 = scmp.lt.s32.totalorder %s11, 3
    %p141 = pnand %p139, %p140
    %p142 = pneg %p141
    // Predicated region
    $region9: #{gblock_forward.2} parent=5 // pred_check
      _
    $region10: #{gblock_forward.2} parent=5 // pred_check_branch
      %144 = sbr.rel (%p141) target = $region12
    $region11: #{gblock_forward.2} parent=5 // pred_region
      %s145 = ssub.s32 %s11, 1
      // Predicated region
      $region13: #{gblock_forward.2} parent=11 // pred_check
        %p146 = pneg %p58
      $region14: #{gblock_forward.2} parent=11 // pred_check_branch
        %148 = sbr.rel (%p146) target = $region16
      $region15: #{gblock_forward.2} parent=11 // pred_region
        _
      $region16: #{gblock_forward.2} parent=11 // pred_fallthru
        _
      // Predicated region
      $region17: #{gblock_forward.2} parent=11 // pred_check
        %p149 = pneg %p79
      $region18: #{gblock_forward.2} parent=11 // pred_check_branch
        %151 = sbr.rel (%p149) target = $region20
      $region19: #{gblock_forward.2} parent=11 // pred_region
        _
      $region20: #{gblock_forward.2} parent=11 // pred_fallthru
        _
    $region12: #{gblock_forward.2} parent=5 // pred_fallthru
      _
    %p152 = scmp.lt.s32.totalorder %s11, 2
    // Predicated region
    $region21: #{gblock_forward.2} parent=5 // pred_check
      %p153 = pneg %p152
    $region22: #{gblock_forward.2} parent=5 // pred_check_branch
      %155 = sbr.rel (%p153) target = $region24
    $region23: #{gblock_forward.2} parent=5 // pred_region
      // Predicated region
      $region25: #{gblock_forward.2} parent=23 // pred_check
        %p156 = pneg %p31
      $region26: #{gblock_forward.2} parent=23 // pred_check_branch
        %158 = sbr.rel (%p156) target = $region28
      $region27: #{gblock_forward.2} parent=23 // pred_region
        %p159 = scmp.lt.s32.totalorder %s11, 1
        %s160 = scalar_select %p159, %s11, 1
        %s161 = smul.addr %s160, 5
        %s162 = smul.addr %s161, 4
        %s163 = scalar_lea.vmem %s0, %s162
      $region28: #{gblock_forward.2} parent=23 // pred_fallthru
        _
    $region24: #{gblock_forward.2} parent=5 // pred_fallthru
      _
    %p164 = scmp.le.s32.totalorder 1, %s11
    %p165 = scmp.lt.s32.totalorder %s11, 3
    %p166 = pnand %p164, %p165
    %p167 = pneg %p166
    // Predicated region
    $region29: #{gblock_forward.2} parent=5 // pred_check
      _
    $region30: #{gblock_forward.2} parent=5 // pred_check_branch
      %169 = sbr.rel (%p166) target = $region32
    $region31: #{gblock_forward.2} parent=5 // pred_region
      %s170 = ssub.s32 %s11, 1
      %p171 = scmp.lt.s32.totalorder %s16, 1
      %s172 = scalar_select %p171, %s16, 1
      %s173 = smul.addr %s172, 5
      %s174 = smul.addr %s173, 4
      %s175 = scalar_lea.vmem %s0, %s174
      %p176 = pneg %p37
      %p177 = pneg %p34
      %p178 = pneg %p58
      %p179 = pneg %p55
      %p180 = pneg %p79
      %p181 = pneg %p76
      %p182 = pneg %p105
      %p183 = pneg %p102
      %p184 = scmp.lt.s32.totalorder %s16, 1
      %s185 = scalar_select %p184, %s16, 1
      %s186 = smul.addr %s185, 10
      %s187 = smul.addr %s186, 4
      %s188 = scalar_lea.vmem %s3, %s187
      %p189 = pneg %p131
      %p190 = pneg %p128
      %p191 = scmp.lt.s32.totalorder %s16, 1
      %s192 = scalar_select %p191, %s16, 1
      %s193 = smul.addr %s192, 8
      %s194 = scalar_lea.vmem %s4, %s193
      %p195 = scmp.lt.s32.totalorder %s16, 1
      %s196 = scalar_select %p195, %s16, 1
      %s197 = smul.addr %s196, 5
      %s198 = smul.addr %s197, 4
      %s199 = scalar_lea.vmem %s0, %s198
      %p200 = scmp.lt.s32.totalorder %s16, 1
      %s201 = scalar_select %p200, %s16, 1
      %s202 = smul.addr %s201, 10
      %s203 = smul.addr %s202, 4
      %s204 = scalar_lea.vmem %s3, %s203
      %p205 = scmp.lt.s32.totalorder %s16, 1
      %s206 = scalar_select %p205, %s16, 1
      %s207 = smul.addr %s206, 8
      %s208 = scalar_lea.vmem %s4, %s207
      %v210 = vld [vmem:[%s199] sm:$0xff]
      %v211 = vld [vmem:[%s199 + $0x8] sm:$0xff]
      %v212 = vld [vmem:[%s199 + $0x10] sm:$0xf]
      %vm213 = vcmp.gt.f32.partialorder %v210, 0.0
      %vm214 = vcmp.gt.f32.partialorder %v211, 0.0
      %vm215 = vcmp.gt.f32.partialorder %v212, 0.0
      %v216 = vmul.f32 %v210, 0.1
      %v217 = vmul.f32 %v211, 0.1
      %v218 = vmul.f32 %v212, 0.1
      %v219 = vsel %vm213, %v210, %v216
      %v220 = vsel %vm214, %v211, %v217
      %v221 = vsel %vm215, %v212, %v218
      %v225 = vcombine.high %v219, %v219
      %v226 = vcombine.high %v220, %v220
      %v229 = vcombine.low %v219, %v219
      %v230 = vcombine.low %v220, %v220
      %v231 = vcombine.low %v221, %v221
      %232 = vrot.lane.b32.xlu0 %v229, 127
      %v233 = vpop.permute.xlu0 %232
      %234 = vrot.lane.b32.xlu0 %v219, 127
      %v235 = vpop.permute.xlu0 %234
      %236 = vrot.lane.b32.xlu0 %v230, 127
      %v237 = vpop.permute.xlu0 %236
      %238 = vrot.lane.b32.xlu0 %v220, 127
      %v239 = vpop.permute.xlu0 %238
      %240 = vrot.lane.b32.xlu0 %v231, 127
      %v241 = vpop.permute.xlu0 %240
      %vm242 = vcmask 1039360
      %v243 = vsel %vm242, %v233, %v235
      %v244 = vsel %vm242, %v235, %v237
      %v245 = vsel %vm242, %v237, %v239
      %v246 = vsel %vm242, %v239, %v241
      %252 = vrot.lane.b32.xlu0 %v219, 126
      %v253 = vpop.permute.xlu0 %252
      %254 = vrot.lane.b32.xlu0 %v225, 126
      %v255 = vpop.permute.xlu0 %254
      %256 = vrot.lane.b32.xlu0 %v220, 126
      %v257 = vpop.permute.xlu0 %256
      %258 = vrot.lane.b32.xlu0 %v226, 126
      %v259 = vpop.permute.xlu0 %258
      %260 = vrot.lane.b32.xlu0 %v221, 126
      %v261 = vpop.permute.xlu0 %260
      %vm262 = vcmask 1031168
      %v263 = vsel %vm262, %v253, %v255
      %v264 = vsel %vm262, %v255, %v257
      %v265 = vsel %vm262, %v257, %v259
      %v266 = vsel %vm262, %v259, %v261
      %272 = vrot.lane.b32.xlu0 %v229, 94
      %v273 = vpop.permute.xlu0 %272
      %274 = vrot.lane.b32.xlu0 %v219, 94
      %v275 = vpop.permute.xlu0 %274
      %276 = vrot.lane.b32.xlu0 %v230, 94
      %v277 = vpop.permute.xlu0 %276
      %278 = vrot.lane.b32.xlu0 %v220, 94
      %v279 = vpop.permute.xlu0 %278
      %280 = vrot.lane.b32.xlu0 %v231, 94
      %v281 = vpop.permute.xlu0 %280
      %vm282 = vcmask 769024
      %v283 = vsel %vm282, %v273, %v275
      %v284 = vsel %vm282, %v275, %v277
      %v285 = vsel %vm282, %v277, %v279
      %v286 = vsel %vm282, %v279, %v281
      %292 = vrot.lane.b32.xlu0 %v219, 93
      %v293 = vpop.permute.xlu0 %292
      %294 = vrot.lane.b32.xlu0 %v225, 93
      %v295 = vpop.permute.xlu0 %294
      %296 = vrot.lane.b32.xlu0 %v220, 93
      %v297 = vpop.permute.xlu0 %296
      %298 = vrot.lane.b32.xlu0 %v226, 93
      %v299 = vpop.permute.xlu0 %298
      %300 = vrot.lane.b32.xlu0 %v221, 93
      %v301 = vpop.permute.xlu0 %300
      %vm302 = vcmask 760832
      %v303 = vsel %vm302, %v293, %v295
      %v304 = vsel %vm302, %v295, %v297
      %v305 = vsel %vm302, %v297, %v299
      %v306 = vsel %vm302, %v299, %v301
      %312 = vrot.lane.b32.xlu0 %v229, 92
      %v313 = vpop.permute.xlu0 %312
      %314 = vrot.lane.b32.xlu0 %v219, 92
      %v315 = vpop.permute.xlu0 %314
      %316 = vrot.lane.b32.xlu0 %v230, 92
      %v317 = vpop.permute.xlu0 %316
      %318 = vrot.lane.b32.xlu0 %v220, 92
      %v319 = vpop.permute.xlu0 %318
      %320 = vrot.lane.b32.xlu0 %v231, 92
      %v321 = vpop.permute.xlu0 %320
      %vm322 = vcmask 752640
      %v323 = vsel %vm322, %v313, %v315
      %v324 = vsel %vm322, %v315, %v317
      %v325 = vsel %vm322, %v317, %v319
      %v326 = vsel %vm322, %v319, %v321
      %332 = vrot.lane.b32.xlu0 %v219, 60
      %v333 = vpop.permute.xlu0 %332
      %334 = vrot.lane.b32.xlu0 %v225, 60
      %v335 = vpop.permute.xlu0 %334
      %336 = vrot.lane.b32.xlu0 %v220, 60
      %v337 = vpop.permute.xlu0 %336
      %338 = vrot.lane.b32.xlu0 %v226, 60
      %v339 = vpop.permute.xlu0 %338
      %340 = vrot.lane.b32.xlu0 %v221, 60
      %v341 = vpop.permute.xlu0 %340
      %vm342 = vcmask 490496
      %v343 = vsel %vm342, %v333, %v335
      %v344 = vsel %vm342, %v335, %v337
      %v345 = vsel %vm342, %v337, %v339
      %v346 = vsel %vm342, %v339, %v341
      %352 = vrot.lane.b32.xlu0 %v229, 59
      %v353 = vpop.permute.xlu0 %352
      %354 = vrot.lane.b32.xlu0 %v219, 59
      %v355 = vpop.permute.xlu0 %354
      %356 = vrot.lane.b32.xlu0 %v230, 59
      %v357 = vpop.permute.xlu0 %356
      %358 = vrot.lane.b32.xlu0 %v220, 59
      %v359 = vpop.permute.xlu0 %358
      %360 = vrot.lane.b32.xlu0 %v231, 59
      %v361 = vpop.permute.xlu0 %360
      %vm362 = vcmask 482304
      %v363 = vsel %vm362, %v353, %v355
      %v364 = vsel %vm362, %v355, %v357
      %v365 = vsel %vm362, %v357, %v359
      %v366 = vsel %vm362, %v359, %v361
      %372 = vrot.lane.b32.xlu0 %v219, 58
      %v373 = vpop.permute.xlu0 %372
      %374 = vrot.lane.b32.xlu0 %v225, 58
      %v375 = vpop.permute.xlu0 %374
      %376 = vrot.lane.b32.xlu0 %v220, 58
      %v377 = vpop.permute.xlu0 %376
      %378 = vrot.lane.b32.xlu0 %v226, 58
      %v379 = vpop.permute.xlu0 %378
      %380 = vrot.lane.b32.xlu0 %v221, 58
      %v381 = vpop.permute.xlu0 %380
      %vm382 = vcmask 474112
      %v383 = vsel %vm382, %v373, %v375
      %v384 = vsel %vm382, %v375, %v377
      %v385 = vsel %vm382, %v377, %v379
      %v386 = vsel %vm382, %v379, %v381
      %vm392 = vcmask 1043456
      %v393 = vsel %vm392, %v219, %v243
      %v394 = vsel %vm392, %v225, %v244
      %v395 = vsel %vm392, %v220, %v245
      %v396 = vsel %vm392, %v226, %v246
      %v397 = vsel %vm392, %v221, %v241
      %v398 = vsel %vm392, %v263, %v283
      %v399 = vsel %vm392, %v264, %v284
      %v400 = vsel %vm392, %v265, %v285
      %v401 = vsel %vm392, %v266, %v286
      %v402 = vsel %vm392, %v261, %v281
      %v403 = vsel %vm392, %v303, %v323
      %v404 = vsel %vm392, %v304, %v324
      %v405 = vsel %vm392, %v305, %v325
      %v406 = vsel %vm392, %v306, %v326
      %v407 = vsel %vm392, %v301, %v321
      %v408 = vsel %vm392, %v343, %v363
      %v409 = vsel %vm392, %v344, %v364
      %v410 = vsel %vm392, %v345, %v365
      %v411 = vsel %vm392, %v346, %v366
      %v412 = vsel %vm392, %v341, %v361
      %v413 = vpack.c.bf16 %v398, %v393
      %v414 = vpack.c.bf16 %v399, %v394
      %v415 = vpack.c.bf16 %v400, %v395
      %v416 = vpack.c.bf16 %v401, %v396
      %v417 = vpack.c.bf16 %v402, %v397
      %v418 = vpack.c.bf16 %v408, %v403
      %v419 = vpack.c.bf16 %v409, %v404
      %v420 = vpack.c.bf16 %v410, %v405
      %v421 = vpack.c.bf16 %v411, %v406
      %v422 = vpack.c.bf16 %v412, %v407
      %v423 = vpack.c.bf16 %v383, %v383
      %v424 = vpack.c.bf16 %v384, %v384
      %v425 = vpack.c.bf16 %v385, %v385
      %v426 = vpack.c.bf16 %v386, %v386
      %v427 = vpack.c.bf16 %v381, %v381
      %v428 = vld [vmem:[%s1] sm:$0xf]
      %v429 = vld [vmem:[%s1 + $0x4] sm:$0xf]
      %v432 = vunpack.c.l.b16 %v428
      %v433 = vunpack.c.l.b16 %v429
      %v434 = vpack.c.b16 %v433, %v432
      %vm435 = vcmask 293888
      %v437 = vsel %vm435, %v434, 0
      %vm439 = vcmask 1041408
      %v441 = vsel %vm439, %v423, 0
      %v444 = vsel %vm439, %v424, 0
      %v447 = vsel %vm439, %v425, 0
      %v450 = vsel %vm439, %v426, 0
      %v453 = vsel %vm439, %v427, 0
      %455 = vmatprep.subr.bf16.mxu0 %v414
      %456 = vmatpush1.bf16.msra.mxu0 %v413
      %457 = vmatprep.subr.bf16.mxu0 %v419
      %458 = vmatpush1.bf16.msra.mxu0 %v418
      %459 = vmatprep.subr.bf16.mxu0 %v444
      %460 = vmatpush1.bf16.msra.mxu0 %v441
      %461 = vmatprep.subr.bf16.mxu0 0
      %462 = vmatpush1.bf16.msra.mxu0 0
      %463 = vmatprep.subr.bf16.mxu0 0
      %464 = vmatpush1.bf16.msra.mxu0 0
      %465 = vmatprep.subr.bf16.mxu0 0
      %466 = vmatpush1.bf16.msra.mxu0 0
      %467 = vmatprep.subr.bf16.mxu0 0
      %468 = vmatpush1.bf16.msra.mxu0 0
      %469 = vmatprep.subr.bf16.mxu0 0
      %470 = vmatpush1.bf16.msra.mxu0 0
      %471 = vmatprep.subr.bf16.mxu0 0
      %472 = vmatpush1.bf16.msra.mxu0 0
      %473 = vmatprep.subr.bf16.mxu0 0
      %474 = vmatpush1.bf16.msra.mxu0 0
      %475 = vmatprep.subr.bf16.mxu0 0
      %476 = vmatpush1.bf16.msra.mxu0 0
      %477 = vmatprep.subr.bf16.mxu0 0
      %478 = vmatpush1.bf16.msra.mxu0 0
      %479 = vmatprep.subr.bf16.mxu0 0
      %480 = vmatpush1.bf16.msra.mxu0 0
      %481 = vmatprep.subr.bf16.mxu0 0
      %482 = vmatpush1.bf16.msra.mxu0 0
      %483 = vmatprep.subr.bf16.mxu0 0
      %484 = vmatpush1.bf16.msra.mxu0 0
      %485 = vmatprep.subr.bf16.mxu0 0
      %486 = vmatpush1.bf16.msra.mxu0 0
      %487 = vmatprep.mubr.bf16.mxu0 0
      %488 = vmatmul.mubr.bf16.gmra.mrb[0].mxu0 %v437
      %v489 = vpop.f32.mrb[0].mxu0
      %v490 = vadd.f32 0.0, %v489
      %v491 = vpop.f32.mrb[0].mxu0
      %v492 = vadd.f32 0.0, %v491
      %v493 = vpop.f32.mrb[0].mxu0
      %v494 = vadd.f32 0.0, %v493
      %v495 = vpop.f32.mrb[0].mxu0
      %v496 = vadd.f32 0.0, %v495
      %497 = vdwg.mxu0
      %498 = vmatprep.subr.bf16.mxu0 %v416
      %499 = vmatpush1.bf16.msra.mxu0 %v415
      %500 = vmatprep.subr.bf16.mxu0 %v421
      %501 = vmatpush1.bf16.msra.mxu0 %v420
      %502 = vmatprep.subr.bf16.mxu0 %v450
      %503 = vmatpush1.bf16.msra.mxu0 %v447
      %504 = vmatprep.subr.bf16.mxu0 0
      %505 = vmatpush1.bf16.msra.mxu0 0
      %506 = vmatprep.subr.bf16.mxu0 0
      %507 = vmatpush1.bf16.msra.mxu0 0
      %508 = vmatprep.subr.bf16.mxu0 0
      %509 = vmatpush1.bf16.msra.mxu0 0
      %510 = vmatprep.subr.bf16.mxu0 0
      %511 = vmatpush1.bf16.msra.mxu0 0
      %512 = vmatprep.subr.bf16.mxu0 0
      %513 = vmatpush1.bf16.msra.mxu0 0
      %514 = vmatprep.subr.bf16.mxu0 0
      %515 = vmatpush1.bf16.msra.mxu0 0
      %516 = vmatprep.subr.bf16.mxu0 0
      %517 = vmatpush1.bf16.msra.mxu0 0
      %518 = vmatprep.subr.bf16.mxu0 0
      %519 = vmatpush1.bf16.msra.mxu0 0
      %520 = vmatprep.subr.bf16.mxu0 0
      %521 = vmatpush1.bf16.msra.mxu0 0
      %522 = vmatprep.subr.bf16.mxu0 0
      %523 = vmatpush1.bf16.msra.mxu0 0
      %524 = vmatprep.subr.bf16.mxu0 0
      %525 = vmatpush1.bf16.msra.mxu0 0
      %526 = vmatprep.subr.bf16.mxu0 0
      %527 = vmatpush1.bf16.msra.mxu0 0
      %528 = vmatprep.subr.bf16.mxu0 0
      %529 = vmatpush1.bf16.msra.mxu0 0
      %530 = vmatprep.mubr.bf16.mxu0 0
      %531 = vmatmul.mubr.bf16.gmra.mrb[0].mxu0 %v437
      %v532 = vpop.f32.mrb[0].mxu0
      %v533 = vadd.f32 0.0, %v532
      %v534 = vpop.f32.mrb[0].mxu0
      %v535 = vadd.f32 0.0, %v534
      %v536 = vpop.f32.mrb[0].mxu0
      %v537 = vadd.f32 0.0, %v536
      %v538 = vpop.f32.mrb[0].mxu0
      %v539 = vadd.f32 0.0, %v538
      %540 = vdwg.mxu0
      %541 = vmatprep.subr.bf16.mxu0 0
      %542 = vmatpush1.bf16.msra.mxu0 %v417
      %543 = vmatprep.subr.bf16.mxu0 0
      %544 = vmatpush1.bf16.msra.mxu0 %v422
      %545 = vmatprep.subr.bf16.mxu0 0
      %546 = vmatpush1.bf16.msra.mxu0 %v453
      %547 = vmatprep.subr.bf16.mxu0 0
      %548 = vmatpush1.bf16.msra.mxu0 0
      %549 = vmatprep.subr.bf16.mxu0 0
      %550 = vmatpush1.bf16.msra.mxu0 0
      %551 = vmatprep.subr.bf16.mxu0 0
      %552 = vmatpush1.bf16.msra.mxu0 0
      %553 = vmatprep.subr.bf16.mxu0 0
      %554 = vmatpush1.bf16.msra.mxu0 0
      %555 = vmatprep.subr.bf16.mxu0 0
      %556 = vmatpush1.bf16.msra.mxu0 0
      %557 = vmatprep.subr.bf16.mxu0 0
      %558 = vmatpush1.bf16.msra.mxu0 0
      %559 = vmatprep.subr.bf16.mxu0 0
      %560 = vmatpush1.bf16.msra.mxu0 0
      %561 = vmatprep.subr.bf16.mxu0 0
      %562 = vmatpush1.bf16.msra.mxu0 0
      %563 = vmatprep.subr.bf16.mxu0 0
      %564 = vmatpush1.bf16.msra.mxu0 0
      %565 = vmatprep.subr.bf16.mxu0 0
      %566 = vmatpush1.bf16.msra.mxu0 0
      %567 = vmatprep.subr.bf16.mxu0 0
      %568 = vmatpush1.bf16.msra.mxu0 0
      %569 = vmatprep.subr.bf16.mxu0 0
      %570 = vmatpush1.bf16.msra.mxu0 0
      %571 = vmatprep.subr.bf16.mxu0 0
      %572 = vmatpush1.bf16.msra.mxu0 0
      %573 = vmatprep.mubr.bf16.mxu0 0
      %574 = vmatmul.mubr.bf16.gmra.mrb[0].mxu0 %v437
      %v575 = vpop.f32.mrb[0].mxu0
      %v576 = vadd.f32 0.0, %v575
      %v577 = vpop.f32.mrb[0].mxu0
      %v578 = vpop.f32.mrb[0].mxu0
      %v579 = vadd.f32 0.0, %v578
      %v580 = vpop.f32.mrb[0].mxu0
      %581 = vdwg.mxu0
      %v582 = vld [vmem:[%s2] sm:$0x1f]
      %v584 = vlaneseq
      %v585 = vshrl.u32 %v584, 7
      %v586 = vsub.s32 0, %v585
      %v587 = vrot.slane %v582, %v586
      %v588 = vlaneseq
      %v589 = vshrl.u32 %v588, 7
      %v590 = vsub.s32 1, %v589
      %v591 = vrot.slane %v582, %v590
      %v592 = vlaneseq
      %v593 = vshrl.u32 %v592, 7
      %v594 = vsub.s32 2, %v593
      %v595 = vrot.slane %v582, %v594
      %v596 = vlaneseq
      %v597 = vshrl.u32 %v596, 7
      %v598 = vsub.s32 3, %v597
      %v599 = vrot.slane %v582, %v598
      %v600 = vlaneseq
      %v601 = vshrl.u32 %v600, 7
      %v602 = vsub.s32 4, %v601
      %v603 = vrot.slane %v582, %v602
      %v609 = vmul.f32 %v490, %v587
      %v610 = vmul.f32 %v492, %v591
      %v611 = vmul.f32 %v533, %v595
      %v612 = vmul.f32 %v535, %v599
      %v613 = vmul.f32 %v576, %v603
      %v614 = vmul.f32 %v494, %v587
      %v615 = vmul.f32 %v496, %v591
      %v616 = vmul.f32 %v537, %v595
      %v617 = vmul.f32 %v539, %v599
      %v618 = vmul.f32 %v579, %v603
      %v619 = vadd.f32 %v609, %v610
      %v620 = vadd.f32 %v619, %v611
      %v621 = vadd.f32 %v620, %v612
      %vm622 = vcmask 261120
      %v623 = vsel %vm622, %v613, 0.0
      %v624 = vadd.f32 %v621, %v623
      %625 = vadd.xlane.f32.xlu0 %v624
      %v626 = vpop.xlane.xlu0 %625
      %v627 = vadd.f32 %v614, %v615
      %v628 = vadd.f32 %v627, %v616
      %v629 = vadd.f32 %v628, %v617
      %v630 = vsel %vm622, %v618, 0.0
      %v631 = vadd.f32 %v629, %v630
      %632 = vadd.xlane.f32.xlu0 %v631
      %v633 = vpop.xlane.xlu0 %632
      %v634 = vmul.f32 %v490, %v609
      %v635 = vmul.f32 %v492, %v610
      %v636 = vmul.f32 %v533, %v611
      %v637 = vmul.f32 %v535, %v612
      %v638 = vmul.f32 %v576, %v613
      %v639 = vmul.f32 %v494, %v614
      %v640 = vmul.f32 %v496, %v615
      %v641 = vmul.f32 %v537, %v616
      %v642 = vmul.f32 %v539, %v617
      %v643 = vmul.f32 %v579, %v618
      %v644 = vadd.f32 %v634, %v635
      %v645 = vadd.f32 %v644, %v636
      %v646 = vadd.f32 %v645, %v637
      %v647 = vsel %vm622, %v638, 0.0
      %v648 = vadd.f32 %v646, %v647
      %649 = vadd.xlane.f32.xlu0 %v648
      %v650 = vpop.xlane.xlu0 %649
      %v651 = vadd.f32 %v639, %v640
      %v652 = vadd.f32 %v651, %v641
      %v653 = vadd.f32 %v652, %v642
      %v654 = vsel %vm622, %v643, 0.0
      %v655 = vadd.f32 %v653, %v654
      %656 = vadd.xlane.f32.xlu0 %v655
      %v657 = vpop.xlane.xlu0 %656
      %v658 = vadd.f32 %v626, %v633
      %v659 = vadd.f32 %v650, %v657
      %vm660 = vcmask 7168
      %v661 = vsel %vm660, %v658, %v659
      %vm662 = vcmask 15360
      %663 = vst.msk [vmem:[%s208] sm:$0xff] %vm662, %v661
      %v664 = vpack.c.bf16 %v494, %v490
      %v665 = vpack.c.bf16 %v496, %v492
      %v666 = vpack.c.bf16 %v537, %v533
      %v667 = vpack.c.bf16 %v539, %v535
      %v668 = vpack.c.bf16 %v579, %v576
      %v674 = vunpack.c.l.b16 %v664
      %v675 = vunpack.c.l.b16 %v665
      %v676 = vunpack.c.l.b16 %v666
      %v677 = vunpack.c.l.b16 %v667
      %v678 = vunpack.c.l.b16 %v668
      %v679 = vunpack.c.h.b16 %v664
      %v680 = vunpack.c.h.b16 %v665
      %v681 = vunpack.c.h.b16 %v666
      %v682 = vunpack.c.h.b16 %v667
      %v683 = vunpack.c.h.b16 %v668
      %v684 = vpack.c.b16 %v675, %v674
      %v685 = vpack.c.b16 %v677, %v676
      %v686 = vpack.c.b16 %v678, %v678
      %v687 = vpack.c.b16 %v680, %v679
      %v688 = vpack.c.b16 %v682, %v681
      %v689 = vpack.c.b16 %v683, %v683
      %696 = vst [vmem:[%s204] sm:$0xff] %v684
      %697 = vst [vmem:[%s204 + $0x8] sm:$0xff] %v685
      %vm698 = vcmask 257024
      %699 = vst.msk [vmem:[%s204 + $0x10] sm:$0xf] %vm698, %v686
      %700 = vst [vmem:[%s204 + $0x14] sm:$0xff] %v687
      %701 = vst [vmem:[%s204 + $0x1c] sm:$0xff] %v688
      %702 = vst.msk [vmem:[%s204 + $0x24] sm:$0xf] %vm698, %v689
      %p703 = scmp.lt.s32.totalorder %s16, 1
      %s704 = scalar_select %p703, %s16, 1
      %s705 = smul.addr %s704, 10
      %s706 = smul.addr %s705, 4
      %s707 = scalar_lea.vmem %s3, %s706
      %p708 = scmp.lt.s32.totalorder %s16, 1
      %s709 = scalar_select %p708, %s16, 1
      %s710 = smul.addr %s709, 8
      %s711 = scalar_lea.vmem %s4, %s710
      // Predicated region
      $region33: #{gblock_forward.2} parent=31 // pred_check
        %p712 = pneg %p102
      $region34: #{gblock_forward.2} parent=31 // pred_check_branch
        %714 = sbr.rel (%p712) target = $region36
      $region35: #{gblock_forward.2} parent=31 // pred_region
        _
      $region36: #{gblock_forward.2} parent=31 // pred_fallthru
        _
      // Predicated region
      $region37: #{gblock_forward.2} parent=31 // pred_check
        %p715 = pneg %p128
      $region38: #{gblock_forward.2} parent=31 // pred_check_branch
        %717 = sbr.rel (%p715) target = $region40
      $region39: #{gblock_forward.2} parent=31 // pred_region
        _
      $region40: #{gblock_forward.2} parent=31 // pred_fallthru
        _
    $region32: #{gblock_forward.2} parent=5 // pred_fallthru
      _
    %p718 = scmp.le.s32.totalorder 2, %s11
    // Predicated region
    $region41: #{gblock_forward.2} parent=5 // pred_check
      %p719 = pneg %p718
    $region42: #{gblock_forward.2} parent=5 // pred_check_branch
      %721 = sbr.rel (%p719) target = $region44
    $region43: #{gblock_forward.2} parent=5 // pred_region
      %s722 = ssub.s32 %s11, 2
      // Predicated region
      $region45: #{gblock_forward.2} parent=43 // pred_check
        %p723 = pneg %p108
      $region46: #{gblock_forward.2} parent=43 // pred_check_branch
        %725 = sbr.rel (%p723) target = $region48
      $region47: #{gblock_forward.2} parent=43 // pred_region
        %p726 = scmp.lt.s32.totalorder %s17, 1
        %s727 = scalar_select %p726, %s17, 1
        %s728 = smul.addr %s727, 10
        %s729 = smul.addr %s728, 4
        %s730 = scalar_lea.vmem %s3, %s729
      $region48: #{gblock_forward.2} parent=43 // pred_fallthru
        _
      // Predicated region
      $region49: #{gblock_forward.2} parent=43 // pred_check
        %p731 = pneg %p134
      $region50: #{gblock_forward.2} parent=43 // pred_check_branch
        %733 = sbr.rel (%p731) target = $region52
      $region51: #{gblock_forward.2} parent=43 // pred_region
        %p734 = scmp.lt.s32.totalorder %s17, 1
        %s735 = scalar_select %p734, %s17, 1
        %s736 = smul.addr %s735, 8
        %s737 = scalar_lea.vmem %s4, %s736
      $region52: #{gblock_forward.2} parent=43 // pred_fallthru
        _
    $region44: #{gblock_forward.2} parent=5 // pred_fallthru
      _
  $region6: #{gblock_forward.2} parent=0 // loop_footer
    %s15 = sadd.s32 1, %s11
  $region7: #{gblock_forward.2} parent=0 // loop_footer_branch
    %10 = sbr.rel target = $region3
  $region8: #{gblock_forward.2} parent=0 // loop_exit
    _

</llo_original>
